<compile_context>
chip_gen: v5e
topology: v5e:2x2
jax: 0.10.0
libtpu: 0.0.40
codegen_flags: <defaults>
</compile_context>

<pallas_src>
import numpy as np
import jax
import jax.numpy as jnp
from jax.experimental import pallas as pl
from jax.experimental.pallas import tpu as pltpu

# Module hyper-parameters (n_in / n_out chosen small; ch1/hid/kernel fixed by __init__).
N_IN = 16
N_OUT = 4
CH1 = 5        # self.ch1
HID = 10       # self.hid
K = 5          # conv kernel_size
PAD = 2        # conv padding
FLAT = CH1 * N_IN          # 80 = flattened conv output width
LANE = 128                 # lane-dense padded width for the hidden layers
N_OUT_PAD = 8              # padded output width (full-array last dim for out BlockSpec)


# ----------------------------------------------------------------------------- kernel
def convnet_kernel(x_ref, wc_ref, w_ref, b_ref, out_ref):
    """One batch tile of the whole forward pass: 4 bf16 MXU matmuls, f32 accum + ReLU.

    x_ref  : (TB, N_IN)        f32   input tile
    wc_ref : (N_IN, LANE)      bf16  banded conv matrix (padding folded in), cols>=FLAT are 0
    w_ref  : (3, LANE, LANE)   bf16  stacked, zero-padded linear weights (in, out) layout
    b_ref  : (8, LANE)         f32   row 0 = conv bias per flat column, rows 1..3 = b1,b2,b3
    out_ref: (TB, N_OUT_PAD)   f32   cols >= N_OUT are 0
    """
    x = x_ref[...].astype(jnp.bfloat16)

    # Conv1d(in=1, out=CH1, k=5, pad=2) + channel-major flatten (c*N_IN + t) + bias + ReLU.
    h = jnp.dot(x, wc_ref[...], preferred_element_type=jnp.float32) + b_ref[0:1, :]
    h = jnp.maximum(h, 0.0)

    # flat_in_h -> ReLU, flat_h_h -> ReLU, flat_h_out -> ReLU (module ReLUs the output too).
    for k in range(3):
        h = jnp.dot(h.astype(jnp.bfloat16), w_ref[k],
                    preferred_element_type=jnp.float32) + b_ref[k + 1:k + 2, :]
        h = jnp.maximum(h, 0.0)

    # Only the first N_OUT_PAD lanes carry real data; narrow store (masked vst is cheap,
    # the vst slot has huge slack here) saves 16x HBM writeback vs a 128-lane output.
    out_ref[...] = h[:, :N_OUT_PAD]


# ----------------------------------------------------------------------------- params
def init_params(key):
    """Deterministic synthetic parameters with the module's natural shapes."""
    ks = jax.random.split(key, 8)
    cw = jax.random.normal(ks[0], (CH1, K), jnp.float32) * 0.3           # conv1.weight (ch1,1,K) squeezed
    cb = jax.random.normal(ks[1], (CH1,), jnp.float32) * 0.1             # conv1.bias
    w1 = jax.random.normal(ks[2], (FLAT, HID), jnp.float32) * 0.1        # flat_in_h.weight.T
    b1 = jax.random.normal(ks[3], (HID,), jnp.float32) * 0.1
    w2 = jax.random.normal(ks[4], (HID, HID), jnp.float32) * 0.1         # flat_h_h.weight.T
    b2 = jax.random.normal(ks[5], (HID,), jnp.float32) * 0.1
    w3 = jax.random.normal(ks[6], (HID, N_OUT), jnp.float32) * 0.1       # flat_h_out.weight.T
    b3 = jax.random.normal(ks[7], (N_OUT,), jnp.float32) * 0.1
    return cw, cb, w1, b1, w2, b2, w3, b3


def pack_params(params):
    """Host-side (numpy) packing: banded conv matrix + fused, lane-padded bf16 weights."""
    cw, cb, w1, b1, w2, b2, w3, b3 = [np.asarray(p, np.float32) for p in params]

    # Banded conv matrix with the zero padding of Conv1d folded in:
    #   out[b, c*N_IN + t] = cb[c] + sum_k cw[c,k] * x[b, t+k-PAD]   (0 outside [0, N_IN))
    wc = np.zeros((N_IN, LANE), np.float32)
    for c in range(CH1):
        for t in range(N_IN):
            for k in range(K):
                i = t + k - PAD
                if 0 <= i < N_IN:
                    wc[i, c * N_IN + t] = cw[c, k]

    # Stack the three linear layers into one (3, LANE, LANE) tensor (zero-padded).
    wstack = np.zeros((3, LANE, LANE), np.float32)
    for idx, w in enumerate((w1, w2, w3)):
        wstack[idx, :w.shape[0], :w.shape[1]] = w

    # One (8, LANE) bias slab: row 0 = conv bias repeated per time-step, rows 1..3 = b1,b2,b3.
    bstack = np.zeros((8, LANE), np.float32)
    bstack[0, :FLAT] = np.repeat(cb, N_IN)
    for idx, b in enumerate((b1, b2, b3)):
        bstack[idx + 1, :b.shape[0]] = b

    return (jnp.asarray(wc, jnp.bfloat16),
            jnp.asarray(wstack, jnp.bfloat16),
            jnp.asarray(bstack, jnp.float32))


# ----------------------------------------------------------------------------- wrapper
def _round_up(n, m):
    return ((n + m - 1) // m) * m


def convnet_forward(x, packed_params, max_tile=4096):
    """x: (B, N_IN) f32 -> (B, N_OUT) f32."""
    wc, wstack, bstack = packed_params
    x = x.astype(jnp.float32)
    B = x.shape[0]

    # Adaptive batch tile:
    #   * >= 2 grid steps whenever B > 8 so "parallel" can shard across v7x's 2 TCs,
    #   * TB fitted to B (multiple of 8 sublanes) so padding waste is < 8 rows/tile,
    #   * capped at max_tile=4096 -> per-tile VMEM use stays a few MiB even on v7x
    #     (64 MiB physical / 32 MiB default scoped); raise vmem_limit_bytes via
    #     CompilerParams before pushing TB much beyond ~16K.
    n_tiles = max(pl.cdiv(B, max_tile), 2 if B > 8 else 1)
    TB = _round_up(pl.cdiv(B, n_tiles), 8)
    B_pad = _round_up(B, TB)
    if B_pad != B:
        x = jnp.pad(x, ((0, B_pad - B), (0, 0)))
    grid = B_pad // TB

    grid_spec = pltpu.PrefetchScalarGridSpec(
        num_scalar_prefetch=0,
        grid=(grid,),
        in_specs=[
            pl.BlockSpec((TB, N_IN), lambda i: (i, 0)),          # x tile (pipelined)
            pl.BlockSpec((N_IN, LANE), lambda i: (0, 0)),        # banded conv matrix (bf16)
            pl.BlockSpec((3, LANE, LANE), lambda i: (0, 0, 0)),  # stacked linear weights (bf16)
            pl.BlockSpec((8, LANE), lambda i: (0, 0)),           # bias slab (f32)
        ],
        out_specs=pl.BlockSpec((TB, N_OUT_PAD), lambda i: (i, 0)),
    )

    out = pl.pallas_call(
        convnet_kernel,
        out_shape=jax.ShapeDtypeStruct((B_pad, N_OUT_PAD), jnp.float32),
        grid_spec=grid_spec,
        compiler_params=pltpu.CompilerParams(
            dimension_semantics=("parallel",)),                  # shard batch across TCs (v7x)
    )(x, wc, wstack, bstack)

    return out[:B, :N_OUT]


# ----------------------------------------------------------------------------- reference
def convnet_reference(x, params):
    """Plain-JAX f32 reference (original unpadded parameters, FIR formulation)."""
    cw, cb, w1, b1, w2, b2, w3, b3 = params
    x = x.astype(jnp.float32)
    x_pad = jnp.pad(x, ((0, 0), (PAD, PAD)))
    chans = []
    for c in range(CH1):
        acc = jnp.zeros((x.shape[0], N_IN), jnp.float32)
        for k in range(K):
            acc = acc + cw[c, k] * x_pad[:, k:k + N_IN]
        chans.append(jnp.maximum(acc + cb[c], 0.0))
    h = jnp.concatenate(chans, axis=-1)                          # (B, CH1*N_IN), channel-major
    h = jnp.maximum(h @ w1 + b1[None, :], 0.0)
    h = jnp.maximum(h @ w2 + b2[None, :], 0.0)
    return jnp.maximum(h @ w3 + b3[None, :], 0.0)


if __name__ == "__main__":
    key_x, key_p = jax.random.split(jax.random.PRNGKey(0))
    params = init_params(key_p)
    packed = pack_params(params)

    # Small shape consistent with the module: batch=2, n_in=16.
    x_small = jax.random.normal(key_x, (2, N_IN), jnp.float32)
    out_small = jax.block_until_ready(convnet_forward(x_small, packed))
    ref_small = convnet_reference(x_small, params)
    assert out_small.shape == (2, N_OUT)
    # bf16 weights vs f32 reference -> tolerance-level differences only.
    assert jnp.allclose(out_small, ref_small, atol=5e-2, rtol=5e-2), \
        "Pallas output mismatch vs reference (small batch)"

    # Exercise the multi-tile / ragged-batch path (adaptive TB, grid >= 2).
    x_big = jax.random.normal(jax.random.PRNGKey(1), (300, N_IN), jnp.float32)
    out_big = jax.block_until_ready(convnet_forward(x_big, packed))
    ref_big = convnet_reference(x_big, params)
    assert out_big.shape == (300, N_OUT)
    assert jnp.allclose(out_big, ref_big, atol=5e-2, rtol=5e-2), \
        "Pallas output mismatch vs reference (multi-tile batch)"

    print("KERNEL_OK")
</pallas_src>

<mosaic_0001>
module attributes {stable_mosaic.version = 11 : i64} {
  func.func @convnet_kernel(%arg0: i32, %arg1: memref<8x16xf32, #tpu.memory_space<vmem>>, %arg2: memref<16x128xbf16, #tpu.memory_space<vmem>>, %arg3: memref<3x128x128xbf16, #tpu.memory_space<vmem>>, %arg4: memref<8x128xf32, #tpu.memory_space<vmem>>, %arg5: memref<8x8xf32, #tpu.memory_space<vmem>>) attributes {dimension_semantics = [#tpu.dimension_semantics<parallel>], iteration_bounds = array<i64: 1>, scalar_prefetch = 0 : i64, scratch_operands = 0 : i64, tpu.core_type = #tpu.core_type<tc>, window_params = [{transform_indices = @transform_0, window_bounds = array<i64: 8, 16>}, {pipeline_mode = #tpu.pipeline_mode<synchronous>, transform_indices = @transform_1, window_bounds = array<i64: 16, 128>}, {pipeline_mode = #tpu.pipeline_mode<synchronous>, transform_indices = @transform_2, window_bounds = array<i64: 3, 128, 128>}, {pipeline_mode = #tpu.pipeline_mode<synchronous>, transform_indices = @transform_3, window_bounds = array<i64: 8, 128>}, {transform_indices = @transform_4, window_bounds = array<i64: 8, 8>}]} {
    %c0 = arith.constant 0 : index
    %c0_0 = arith.constant 0 : index
    %0 = vector.load %arg1[%c0, %c0_0] : memref<8x16xf32, #tpu.memory_space<vmem>>, vector<8x16xf32>
    %1 = arith.truncf %0 : vector<8x16xf32> to vector<8x16xbf16>
    %c0_1 = arith.constant 0 : index
    %c0_2 = arith.constant 0 : index
    %2 = vector.load %arg2[%c0_1, %c0_2] : memref<16x128xbf16, #tpu.memory_space<vmem>>, vector<16x128xbf16>
    %cst = arith.constant dense<0.000000e+00> : vector<8x128xf32>
    %3 = tpu.matmul %1, %2, %cst {dimension_numbers = #tpu.dot_dimension_numbers<[1], [0], [0], [1], [0, 0, 1, 1], [], []>} : vector<8x16xbf16>, vector<16x128xbf16>, vector<8x128xf32> -> vector<8x128xf32>
    %c0_3 = arith.constant 0 : index
    %c0_4 = arith.constant 0 : index
    %4 = vector.load %arg4[%c0_3, %c0_4] : memref<8x128xf32, #tpu.memory_space<vmem>>, vector<1x128xf32>
    %5 = vector.broadcast %4 : vector<1x128xf32> to vector<8x128xf32>
    %6 = arith.addf %3, %5 : vector<8x128xf32>
    %cst_5 = arith.constant 0.000000e+00 : f32
    %7 = vector.broadcast %cst_5 : f32 to vector<8x128xf32>
    %8 = arith.maximumf %6, %7 : vector<8x128xf32>
    %9 = arith.truncf %8 : vector<8x128xf32> to vector<8x128xbf16>
    %c0_6 = arith.constant 0 : index
    %c0_7 = arith.constant 0 : index
    %c0_8 = arith.constant 0 : index
    %10 = vector.load %arg3[%c0_6, %c0_7, %c0_8] : memref<3x128x128xbf16, #tpu.memory_space<vmem>>, vector<1x128x128xbf16>
    %11 = vector.shape_cast %10 : vector<1x128x128xbf16> to vector<128x128xbf16>
    %cst_9 = arith.constant dense<0.000000e+00> : vector<8x128xf32>
    %12 = tpu.matmul %9, %11, %cst_9 {dimension_numbers = #tpu.dot_dimension_numbers<[1], [0], [0], [1], [0, 0, 1, 1], [], []>} : vector<8x128xbf16>, vector<128x128xbf16>, vector<8x128xf32> -> vector<8x128xf32>
    %c1 = arith.constant 1 : index
    %c0_10 = arith.constant 0 : index
    %13 = vector.load %arg4[%c1, %c0_10] : memref<8x128xf32, #tpu.memory_space<vmem>>, vector<1x128xf32>
    %14 = vector.broadcast %13 : vector<1x128xf32> to vector<8x128xf32>
    %15 = arith.addf %12, %14 : vector<8x128xf32>
    %cst_11 = arith.constant 0.000000e+00 : f32
    %16 = vector.broadcast %cst_11 : f32 to vector<8x128xf32>
    %17 = arith.maximumf %15, %16 : vector<8x128xf32>
    %18 = arith.truncf %17 : vector<8x128xf32> to vector<8x128xbf16>
    %c1_12 = arith.constant 1 : index
    %c0_13 = arith.constant 0 : index
    %c0_14 = arith.constant 0 : index
    %19 = vector.load %arg3[%c1_12, %c0_13, %c0_14] : memref<3x128x128xbf16, #tpu.memory_space<vmem>>, vector<1x128x128xbf16>
    %20 = vector.shape_cast %19 : vector<1x128x128xbf16> to vector<128x128xbf16>
    %cst_15 = arith.constant dense<0.000000e+00> : vector<8x128xf32>
    %21 = tpu.matmul %18, %20, %cst_15 {dimension_numbers = #tpu.dot_dimension_numbers<[1], [0], [0], [1], [0, 0, 1, 1], [], []>} : vector<8x128xbf16>, vector<128x128xbf16>, vector<8x128xf32> -> vector<8x128xf32>
    %c2 = arith.constant 2 : index
    %c0_16 = arith.constant 0 : index
    %22 = vector.load %arg4[%c2, %c0_16] : memref<8x128xf32, #tpu.memory_space<vmem>>, vector<1x128xf32>
    %23 = vector.broadcast %22 : vector<1x128xf32> to vector<8x128xf32>
    %24 = arith.addf %21, %23 : vector<8x128xf32>
    %cst_17 = arith.constant 0.000000e+00 : f32
    %25 = vector.broadcast %cst_17 : f32 to vector<8x128xf32>
    %26 = arith.maximumf %24, %25 : vector<8x128xf32>
    %27 = arith.truncf %26 : vector<8x128xf32> to vector<8x128xbf16>
    %c2_18 = arith.constant 2 : index
    %c0_19 = arith.constant 0 : index
    %c0_20 = arith.constant 0 : index
    %28 = vector.load %arg3[%c2_18, %c0_19, %c0_20] : memref<3x128x128xbf16, #tpu.memory_space<vmem>>, vector<1x128x128xbf16>
    %29 = vector.shape_cast %28 : vector<1x128x128xbf16> to vector<128x128xbf16>
    %cst_21 = arith.constant dense<0.000000e+00> : vector<8x128xf32>
    %30 = tpu.matmul %27, %29, %cst_21 {dimension_numbers = #tpu.dot_dimension_numbers<[1], [0], [0], [1], [0, 0, 1, 1], [], []>} : vector<8x128xbf16>, vector<128x128xbf16>, vector<8x128xf32> -> vector<8x128xf32>
    %c3 = arith.constant 3 : index
    %c0_22 = arith.constant 0 : index
    %31 = vector.load %arg4[%c3, %c0_22] : memref<8x128xf32, #tpu.memory_space<vmem>>, vector<1x128xf32>
    %32 = vector.broadcast %31 : vector<1x128xf32> to vector<8x128xf32>
    %33 = arith.addf %30, %32 : vector<8x128xf32>
    %cst_23 = arith.constant 0.000000e+00 : f32
    %34 = vector.broadcast %cst_23 : f32 to vector<8x128xf32>
    %35 = arith.maximumf %33, %34 : vector<8x128xf32>
    %36 = vector.extract_strided_slice %35 {offsets = [0, 0], sizes = [8, 8], strides = [1, 1]} : vector<8x128xf32> to vector<8x8xf32>
    %c0_24 = arith.constant 0 : index
    %c0_25 = arith.constant 0 : index
    %37 = vector.load %arg5[%c0_24, %c0_25] : memref<8x8xf32, #tpu.memory_space<vmem>>, vector<8x8xf32>
    tpu.vector_store %arg5[%c0_24, %c0_25], %36 {strides = array<i32>} : memref<8x8xf32, #tpu.memory_space<vmem>>, vector<8x8xf32>,
    return
  }
  func.func @transform_0(%arg0: i32) -> (i32, i32) {
    %c0_i32 = arith.constant 0 : i32
    %c0_i32_0 = arith.constant 0 : i32
    return %arg0, %c0_i32 : i32, i32
  }
  func.func @transform_1(%arg0: i32) -> (i32, i32) {
    %c0_i32 = arith.constant 0 : i32
    %c0_i32_0 = arith.constant 0 : i32
    %c0_i32_1 = arith.constant 0 : i32
    return %c0_i32, %c0_i32_0 : i32, i32
  }
  func.func @transform_2(%arg0: i32) -> (i32, i32, i32) {
    %c0_i32 = arith.constant 0 : i32
    %c0_i32_0 = arith.constant 0 : i32
    %c0_i32_1 = arith.constant 0 : i32
    %c0_i32_2 = arith.constant 0 : i32
    return %c0_i32, %c0_i32_0, %c0_i32_1 : i32, i32, i32
  }
  func.func @transform_3(%arg0: i32) -> (i32, i32) {
    %c0_i32 = arith.constant 0 : i32
    %c0_i32_0 = arith.constant 0 : i32
    %c0_i32_1 = arith.constant 0 : i32
    return %c0_i32, %c0_i32_0 : i32, i32
  }
  func.func @transform_4(%arg0: i32) -> (i32, i32) {
    %c0_i32 = arith.constant 0 : i32
    %c0_i32_0 = arith.constant 0 : i32
    return %arg0, %c0_i32 : i32, i32
  }
}

</mosaic_0001>

<llo_original>
// kernel: tpu_custom_call.1
$region0: #{tpu_custom_call.1}
  #allocation0 [shape = 'u32[]', space=smem, size = 0x4, offset = 0x4, fixed_abs, tag = 'smem constant byte address 0x4 - core index']
  #allocation1 [shape = 'u32[72,128]{1,0:T(1,128)}', space=vmem, size = 0x9000, scoped, tag = 'internal scratch']
  %s0 = inlined_call_operand.hbm [shape: f32[8,16], index: 0, kind: input, shape index: {}]
  %s1 = inlined_call_operand.hbm [shape: bf16[16,128], index: 1, kind: input, shape index: {}]
  %s2 = inlined_call_operand.hbm [shape: bf16[3,128,128], index: 2, kind: input, shape index: {}]
  %s3 = inlined_call_operand.hbm [shape: f32[8,128], index: 3, kind: input, shape index: {}]
  %s4 = inlined_call_operand.hbm [shape: f32[8,8], index: 4, kind: output, shape index: {}]
  %s5 = sld [smem:[#allocation0]]
  $region42: #{tpu_custom_call.1} parent=0
    _
  %s7 = ssub.s32 1, %s5
  %s8 = scalar_select 0, %s7, %s5
  $region1: #{tpu_custom_call.1} parent=0
    #allocation2 [shape = 'u8[4096]{0}', space=vmem, size = 0x1000, scoped, tag = 'input window, operand 0, single buffered']
    #allocation3 [shape = 's32[1]{0}', space=sflag, size = 0x4, scoped, tag = 'scoped memory for tpu_custom_call.1']
    #allocation4 [shape = 's32[1]{0}', space=sflag, size = 0x4, scoped, tag = 'scoped memory for tpu_custom_call.1']
    #allocation5 [shape = 'u8[4096]{0}', space=vmem, size = 0x1000, scoped, tag = 'input window, operand 1, single buffered']
    #allocation6 [shape = 's32[1]{0}', space=sflag, size = 0x4, scoped, tag = 'scoped memory for tpu_custom_call.1']
    #allocation7 [shape = 'u8[98304]{0}', space=vmem, size = 0x18000, scoped, tag = 'input window, operand 2, single buffered']
    #allocation8 [shape = 'u8[4096]{0}', space=vmem, size = 0x1000, scoped, tag = 'input window, operand 3, single buffered']
    #allocation9 [shape = 's32[1]{0}', space=sflag, size = 0x4, scoped, tag = 'scoped memory for tpu_custom_call.1']
    #allocation10 [shape = 'u8[4096]{0}', space=vmem, size = 0x1000, scoped, tag = 'output window, operand 0, single buffered']
    %9 = vsyncpa [#allocation3], 0
    %10 = vsyncpa [#allocation6], 0
    %11 = vsyncpa [#allocation9], 0
    %12 = vsyncpa [#allocation4], 0
    // Predicated region
    $region2: #{tpu_custom_call.1} parent=1 // pred_check
      _
    $region3: #{tpu_custom_call.1} parent=1 // pred_check_branch
      %14 = sbr.rel (0) target = $region5
    $region4: #{tpu_custom_call.1} parent=1 // pred_region
      %16 = vsyncadd [#allocation3], 0
      %s18 = sshll.u32 %s0, 4
      %s19 = int_to_ptr.hbm [resolvable:$true] %s18
      %s20 = sshll.u32 [#allocation2], 4
      %s21 = int_to_ptr.vmem [resolvable:$true] %s20
      %23 = dma.hbm_to_vmem [thread:$0]  %s19, 128, %s21, [#allocation3]
    $region5: #{tpu_custom_call.1} parent=1 // pred_fallthru
      _
    // Predicated region
    $region6: #{tpu_custom_call.1} parent=1 // pred_check
      _
    $region7: #{tpu_custom_call.1} parent=1 // pred_check_branch
      %25 = sbr.rel (0) target = $region9
    $region8: #{tpu_custom_call.1} parent=1 // pred_region
      %27 = vsyncadd [#allocation6], 0
      %s28 = sshll.u32 %s1, 4
      %s29 = int_to_ptr.hbm [resolvable:$true] %s28
      %s30 = sshll.u32 [#allocation5], 4
      %s31 = int_to_ptr.vmem [resolvable:$true] %s30
      %36 = dma.hbm_to_vmem [thread:$0]  %s29, 128, %s31, [#allocation6], 64, 64, 4
    $region9: #{tpu_custom_call.1} parent=1 // pred_fallthru
      _
    // Predicated region
    $region10: #{tpu_custom_call.1} parent=1 // pred_check
      _
    $region11: #{tpu_custom_call.1} parent=1 // pred_check_branch
      %38 = sbr.rel (0) target = $region13
    $region12: #{tpu_custom_call.1} parent=1 // pred_region
      %40 = vsyncadd [#allocation6], 0
      %s41 = sshll.u32 %s2, 4
      %s42 = int_to_ptr.hbm [resolvable:$true] %s41
      %s43 = sshll.u32 [#allocation7], 4
      %s44 = int_to_ptr.vmem [resolvable:$true] %s43
      %49 = dma.hbm_to_vmem [thread:$0]  %s42, 3072, %s44, [#allocation6], 64, 64, 4
    $region13: #{tpu_custom_call.1} parent=1 // pred_fallthru
      _
    // Predicated region
    $region14: #{tpu_custom_call.1} parent=1 // pred_check
      _
    $region15: #{tpu_custom_call.1} parent=1 // pred_check_branch
      %51 = sbr.rel (0) target = $region17
    $region16: #{tpu_custom_call.1} parent=1 // pred_region
      %53 = vsyncadd [#allocation9], 0
      %s55 = sshll.u32 %s3, 4
      %s56 = int_to_ptr.hbm [resolvable:$true] %s55
      %s57 = sshll.u32 [#allocation8], 4
      %s58 = int_to_ptr.vmem [resolvable:$true] %s57
      %60 = dma.hbm_to_vmem [thread:$0]  %s56, 128, %s58, [#allocation9]
    $region17: #{tpu_custom_call.1} parent=1 // pred_fallthru
      _
    // Predicated region
    $region18: #{tpu_custom_call.1} parent=1 // pred_check
      _
    $region19: #{tpu_custom_call.1} parent=1 // pred_check_branch
      %62 = sbr.rel (0) target = $region21
    $region20: #{tpu_custom_call.1} parent=1 // pred_region
      %64 = dma.done [#allocation3], 128
    $region21: #{tpu_custom_call.1} parent=1 // pred_fallthru
      _
    // Predicated region
    $region22: #{tpu_custom_call.1} parent=1 // pred_check
      _
    $region23: #{tpu_custom_call.1} parent=1 // pred_check_branch
      %66 = sbr.rel (0) target = $region25
    $region24: #{tpu_custom_call.1} parent=1 // pred_region
      %68 = dma.done [#allocation6], 128
    $region25: #{tpu_custom_call.1} parent=1 // pred_fallthru
      _
    // Predicated region
    $region26: #{tpu_custom_call.1} parent=1 // pred_check
      _
    $region27: #{tpu_custom_call.1} parent=1 // pred_check_branch
      %70 = sbr.rel (0) target = $region29
    $region28: #{tpu_custom_call.1} parent=1 // pred_region
      %72 = dma.done [#allocation6], 3072
    $region29: #{tpu_custom_call.1} parent=1 // pred_fallthru
      _
    // Predicated region
    $region30: #{tpu_custom_call.1} parent=1 // pred_check
      _
    $region31: #{tpu_custom_call.1} parent=1 // pred_check_branch
      %74 = sbr.rel (0) target = $region33
    $region32: #{tpu_custom_call.1} parent=1 // pred_region
      %76 = dma.done [#allocation9], 128
    $region33: #{tpu_custom_call.1} parent=1 // pred_fallthru
      _
    %v78 = vld [vmem:[#allocation2] sm:$0xff]
    %v79 = vpack.c.bf16 %v78, %v78
    %v80 = vld [vmem:[#allocation5] sm:$0xf]
    %v81 = vld [vmem:[#allocation5 + $0x4] sm:$0xf]
    %v82 = vld [vmem:[#allocation8] sm:$0x1]
    %v83 = vperm.slane %v82, 0
    %v86 = vunpack.c.l.b16 %v80
    %v87 = vunpack.c.l.b16 %v81
    %v88 = vpack.c.b16 %v87, %v86
    %vm90 = vcmask 130048
    %v92 = vsel %vm90, %v79, 0
    %94 = vmatpush.bf16.msra.mxu0 0
    %95 = vmatpush.bf16.msra.mxu0 0
    %96 = vmatpush.bf16.msra.mxu0 0
    %97 = vmatpush.bf16.msra.mxu0 0
    %98 = vmatpush.bf16.msra.mxu0 0
    %99 = vmatpush.bf16.msra.mxu0 0
    %100 = vmatpush.bf16.msra.mxu0 0
    %101 = vmatpush.bf16.msra.mxu0 %v88
    %102 = vmatmul.bf16.gmra.mxu0 %v92
    %v103 = vpop.f32.mrf.mxu0
    %v104 = vadd.f32 %v83, %v103
    %v105 = vpop.f32.mrf.mxu0
    %106 = vdwg.mxu0
    %v107 = vmax.f32 %v104, 0.0
    %v108 = vpack.c.bf16 %v107, %v107
    %v109 = vld [vmem:[#allocation7] sm:$0xf]
    %v110 = vld [vmem:[#allocation7 + $0x4] sm:$0xf]
    %v111 = vld [vmem:[#allocation7 + $0x8] sm:$0xf]
    %v112 = vld [vmem:[#allocation7 + $0xc] sm:$0xf]
    %v113 = vld [vmem:[#allocation7 + $0x10] sm:$0xf]
    %v114 = vld [vmem:[#allocation7 + $0x14] sm:$0xf]
    %v115 = vld [vmem:[#allocation7 + $0x18] sm:$0xf]
    %v116 = vld [vmem:[#allocation7 + $0x1c] sm:$0xf]
    %v117 = vld [vmem:[#allocation7 + $0x20] sm:$0xf]
    %v118 = vld [vmem:[#allocation7 + $0x24] sm:$0xf]
    %v119 = vld [vmem:[#allocation7 + $0x28] sm:$0xf]
    %v120 = vld [vmem:[#allocation7 + $0x2c] sm:$0xf]
    %v121 = vld [vmem:[#allocation7 + $0x30] sm:$0xf]
    %v122 = vld [vmem:[#allocation7 + $0x34] sm:$0xf]
    %v123 = vld [vmem:[#allocation7 + $0x38] sm:$0xf]
    %v124 = vld [vmem:[#allocation7 + $0x3c] sm:$0xf]
    %v125 = vld [vmem:[#allocation8 + $0x1] sm:$0x1]
    %v126 = vperm.slane %v125, 0
    %v143 = vunpack.c.l.b16 %v109
    %v144 = vunpack.c.l.b16 %v110
    %v145 = vunpack.c.l.b16 %v111
    %v146 = vunpack.c.l.b16 %v112
    %v147 = vunpack.c.l.b16 %v113
    %v148 = vunpack.c.l.b16 %v114
    %v149 = vunpack.c.l.b16 %v115
    %v150 = vunpack.c.l.b16 %v116
    %v151 = vunpack.c.l.b16 %v117
    %v152 = vunpack.c.l.b16 %v118
    %v153 = vunpack.c.l.b16 %v119
    %v154 = vunpack.c.l.b16 %v120
    %v155 = vunpack.c.l.b16 %v121
    %v156 = vunpack.c.l.b16 %v122
    %v157 = vunpack.c.l.b16 %v123
    %v158 = vunpack.c.l.b16 %v124
    %v159 = vpack.c.b16 %v144, %v143
    %v160 = vpack.c.b16 %v146, %v145
    %v161 = vpack.c.b16 %v148, %v147
    %v162 = vpack.c.b16 %v150, %v149
    %v163 = vpack.c.b16 %v152, %v151
    %v164 = vpack.c.b16 %v154, %v153
    %v165 = vpack.c.b16 %v156, %v155
    %v166 = vpack.c.b16 %v158, %v157
    %175 = vmatpush.bf16.msra.mxu0 %v166
    %176 = vmatpush.bf16.msra.mxu0 %v165
    %177 = vmatpush.bf16.msra.mxu0 %v164
    %178 = vmatpush.bf16.msra.mxu0 %v163
    %179 = vmatpush.bf16.msra.mxu0 %v162
    %180 = vmatpush.bf16.msra.mxu0 %v161
    %181 = vmatpush.bf16.msra.mxu0 %v160
    %182 = vmatpush.bf16.msra.mxu0 %v159
    %183 = vmatmul.bf16.gmra.mxu0 %v108
    %v184 = vpop.f32.mrf.mxu0
    %v185 = vadd.f32 %v126, %v184
    %v186 = vpop.f32.mrf.mxu0
    %187 = vdwg.mxu0
    %v188 = vmax.f32 %v185, 0.0
    %v189 = vpack.c.bf16 %v188, %v188
    %s190 = scalar_lea.vmem [#allocation7], 64
    %v191 = vld [vmem:[%s190] sm:$0xf]
    %v192 = vld [vmem:[%s190 + $0x4] sm:$0xf]
    %v193 = vld [vmem:[%s190 + $0x8] sm:$0xf]
    %v194 = vld [vmem:[%s190 + $0xc] sm:$0xf]
    %v195 = vld [vmem:[%s190 + $0x10] sm:$0xf]
    %v196 = vld [vmem:[%s190 + $0x14] sm:$0xf]
    %v197 = vld [vmem:[%s190 + $0x18] sm:$0xf]
    %v198 = vld [vmem:[%s190 + $0x1c] sm:$0xf]
    %v199 = vld [vmem:[%s190 + $0x20] sm:$0xf]
    %v200 = vld [vmem:[%s190 + $0x24] sm:$0xf]
    %v201 = vld [vmem:[%s190 + $0x28] sm:$0xf]
    %v202 = vld [vmem:[%s190 + $0x2c] sm:$0xf]
    %v203 = vld [vmem:[%s190 + $0x30] sm:$0xf]
    %v204 = vld [vmem:[%s190 + $0x34] sm:$0xf]
    %v205 = vld [vmem:[%s190 + $0x38] sm:$0xf]
    %v206 = vld [vmem:[%s190 + $0x3c] sm:$0xf]
    %v207 = vld [vmem:[#allocation8 + $0x2] sm:$0x1]
    %v208 = vperm.slane %v207, 0
    %v225 = vunpack.c.l.b16 %v191
    %v226 = vunpack.c.l.b16 %v192
    %v227 = vunpack.c.l.b16 %v193
    %v228 = vunpack.c.l.b16 %v194
    %v229 = vunpack.c.l.b16 %v195
    %v230 = vunpack.c.l.b16 %v196
    %v231 = vunpack.c.l.b16 %v197
    %v232 = vunpack.c.l.b16 %v198
    %v233 = vunpack.c.l.b16 %v199
    %v234 = vunpack.c.l.b16 %v200
    %v235 = vunpack.c.l.b16 %v201
    %v236 = vunpack.c.l.b16 %v202
    %v237 = vunpack.c.l.b16 %v203
    %v238 = vunpack.c.l.b16 %v204
    %v239 = vunpack.c.l.b16 %v205
    %v240 = vunpack.c.l.b16 %v206
    %v241 = vpack.c.b16 %v226, %v225
    %v242 = vpack.c.b16 %v228, %v227
    %v243 = vpack.c.b16 %v230, %v229
    %v244 = vpack.c.b16 %v232, %v231
    %v245 = vpack.c.b16 %v234, %v233
    %v246 = vpack.c.b16 %v236, %v235
    %v247 = vpack.c.b16 %v238, %v237
    %v248 = vpack.c.b16 %v240, %v239
    %257 = vmatpush.bf16.msra.mxu0 %v248
    %258 = vmatpush.bf16.msra.mxu0 %v247
    %259 = vmatpush.bf16.msra.mxu0 %v246
    %260 = vmatpush.bf16.msra.mxu0 %v245
    %261 = vmatpush.bf16.msra.mxu0 %v244
    %262 = vmatpush.bf16.msra.mxu0 %v243
    %263 = vmatpush.bf16.msra.mxu0 %v242
    %264 = vmatpush.bf16.msra.mxu0 %v241
    %265 = vmatmul.bf16.gmra.mxu0 %v189
    %v266 = vpop.f32.mrf.mxu0
    %v267 = vadd.f32 %v208, %v266
    %v268 = vpop.f32.mrf.mxu0
    %269 = vdwg.mxu0
    %v270 = vmax.f32 %v267, 0.0
    %v271 = vpack.c.bf16 %v270, %v270
    %s272 = scalar_lea.vmem [#allocation7], 128
    %v273 = vld [vmem:[%s272] sm:$0xf]
    %v274 = vld [vmem:[%s272 + $0x4] sm:$0xf]
    %v275 = vld [vmem:[%s272 + $0x8] sm:$0xf]
    %v276 = vld [vmem:[%s272 + $0xc] sm:$0xf]
    %v277 = vld [vmem:[%s272 + $0x10] sm:$0xf]
    %v278 = vld [vmem:[%s272 + $0x14] sm:$0xf]
    %v279 = vld [vmem:[%s272 + $0x18] sm:$0xf]
    %v280 = vld [vmem:[%s272 + $0x1c] sm:$0xf]
    %v281 = vld [vmem:[%s272 + $0x20] sm:$0xf]
    %v282 = vld [vmem:[%s272 + $0x24] sm:$0xf]
    %v283 = vld [vmem:[%s272 + $0x28] sm:$0xf]
    %v284 = vld [vmem:[%s272 + $0x2c] sm:$0xf]
    %v285 = vld [vmem:[%s272 + $0x30] sm:$0xf]
    %v286 = vld [vmem:[%s272 + $0x34] sm:$0xf]
    %v287 = vld [vmem:[%s272 + $0x38] sm:$0xf]
    %v288 = vld [vmem:[%s272 + $0x3c] sm:$0xf]
    %v289 = vld [vmem:[#allocation8 + $0x3] sm:$0x1]
    %v290 = vperm.slane %v289, 0
    %v307 = vunpack.c.l.b16 %v273
    %v308 = vunpack.c.l.b16 %v274
    %v309 = vunpack.c.l.b16 %v275
    %v310 = vunpack.c.l.b16 %v276
    %v311 = vunpack.c.l.b16 %v277
    %v312 = vunpack.c.l.b16 %v278
    %v313 = vunpack.c.l.b16 %v279
    %v314 = vunpack.c.l.b16 %v280
    %v315 = vunpack.c.l.b16 %v281
    %v316 = vunpack.c.l.b16 %v282
    %v317 = vunpack.c.l.b16 %v283
    %v318 = vunpack.c.l.b16 %v284
    %v319 = vunpack.c.l.b16 %v285
    %v320 = vunpack.c.l.b16 %v286
    %v321 = vunpack.c.l.b16 %v287
    %v322 = vunpack.c.l.b16 %v288
    %v323 = vpack.c.b16 %v308, %v307
    %v324 = vpack.c.b16 %v310, %v309
    %v325 = vpack.c.b16 %v312, %v311
    %v326 = vpack.c.b16 %v314, %v313
    %v327 = vpack.c.b16 %v316, %v315
    %v328 = vpack.c.b16 %v318, %v317
    %v329 = vpack.c.b16 %v320, %v319
    %v330 = vpack.c.b16 %v322, %v321
    %339 = vmatpush.bf16.msra.mxu0 %v330
    %340 = vmatpush.bf16.msra.mxu0 %v329
    %341 = vmatpush.bf16.msra.mxu0 %v328
    %342 = vmatpush.bf16.msra.mxu0 %v327
    %343 = vmatpush.bf16.msra.mxu0 %v326
    %344 = vmatpush.bf16.msra.mxu0 %v325
    %345 = vmatpush.bf16.msra.mxu0 %v324
    %346 = vmatpush.bf16.msra.mxu0 %v323
    %347 = vmatmul.bf16.gmra.mxu0 %v271
    %v348 = vpop.f32.mrf.mxu0
    %v349 = vadd.f32 %v290, %v348
    %v350 = vpop.f32.mrf.mxu0
    %351 = vdwg.mxu0
    %v352 = vmax.f32 %v349, 0.0
    %vm353 = vcmask 64512
    %354 = vst.msk [vmem:[#allocation10] sm:$0xff] %vm353, %v352
    // Predicated region
    $region34: #{tpu_custom_call.1} parent=1 // pred_check
      _
    $region35: #{tpu_custom_call.1} parent=1 // pred_check_branch
      %356 = sbr.rel (0) target = $region37
    $region36: #{tpu_custom_call.1} parent=1 // pred_region
      %358 = vsyncadd [#allocation4], 0
      %s360 = sshll.u32 [#allocation10], 4
      %s361 = int_to_ptr.vmem [resolvable:$true] %s360
      %s362 = sshll.u32 %s4, 4
      %s363 = int_to_ptr.hbm [resolvable:$true] %s362
      %365 = dma.vmem_to_hbm [thread:$0]  %s361, 128, %s363, [#allocation4]
    $region37: #{tpu_custom_call.1} parent=1 // pred_fallthru
      _
    // Predicated region
    $region38: #{tpu_custom_call.1} parent=1 // pred_check
      _
    $region39: #{tpu_custom_call.1} parent=1 // pred_check_branch
      %367 = sbr.rel (0) target = $region41
    $region40: #{tpu_custom_call.1} parent=1 // pred_region
      %369 = dma.done [#allocation4], 128
    $region41: #{tpu_custom_call.1} parent=1 // pred_fallthru
      _
    %370 = vsyncpa [#allocation3], 1
    %371 = vsyncpa [#allocation6], 1
    %372 = vsyncpa [#allocation9], 1
    %373 = vsyncpa [#allocation4], 1

</llo_original>
